<compile_context>
chip_gen: v6e
topology: v6e:2x2x1
jax: 0.10.0
libtpu: 0.0.40
codegen_flags: <defaults>
</compile_context>

<pallas_src>
import jax
import jax.numpy as jnp
from jax.experimental import pallas as pl
from jax.experimental.pallas import tpu as pltpu

NUM_FTR = 300
LAYER_DIMS = [5, 16, 32, 64, 128, NUM_FTR]


def _round_up(x, m):
    return ((x + m - 1) // m) * m


def _sigmoid(h):
    # logistic(h) == 0.5 * (tanh(h/2) + 1): tanh runs on the EUP slot, the
    # remaining scale/shift is one VPU FMA.  Avoids the VPU divide chain that
    # an exact 1/(1+exp(-h)) reciprocal would lower to.
    return 0.5 * (jnp.tanh(0.5 * h) + 1.0)


def _mlp_kernel(x_ref,
                w1_ref, b1_ref, w2_ref, b2_ref, w3_ref, b3_ref,
                w4_ref, b4_ref, w5_ref, b5_ref,
                o_ref):
    """One batch tile of the 5-layer MLP, entirely in VMEM."""
    x = x_ref[...]

    # Layers 1-3 are tiny (K <= 32): keep them f32, their MXU cost is noise.
    h = _sigmoid(jnp.dot(x, w1_ref[...], preferred_element_type=jnp.float32) + b1_ref[...])
    h = _sigmoid(jnp.dot(h, w2_ref[...], preferred_element_type=jnp.float32) + b2_ref[...])
    h = _sigmoid(jnp.dot(h, w3_ref[...], preferred_element_type=jnp.float32) + b3_ref[...])

    # Layers 4-5 carry ~95% of the FLOPs: bf16 operands (weights pre-cast in
    # the wrapper), f32 accumulation on the MXU.
    h = _sigmoid(jnp.dot(h.astype(w4_ref.dtype), w4_ref[...],
                         preferred_element_type=jnp.float32) + b4_ref[...])
    out = jnp.dot(h.astype(w5_ref.dtype), w5_ref[...],
                  preferred_element_type=jnp.float32) + b5_ref[...]
    o_ref[...] = out.astype(o_ref.dtype)


def nn_regressor_mises_cauchy(x, params, *, tile_m=4096, use_bf16=True,
                              out_dtype=jnp.float32):
    """Forward pass.

    x: [B, 5] float32.  params: list of (W [in,out], b [1,out]).
    out_dtype: pass jnp.bfloat16 to halve the dominant HBM write stream
    (changes output precision, so it is opt-in).
    """
    B = x.shape[0]

    # Batch tile: multiple of 8 (sublane alignment), capped at tile_m.
    # VMEM budget at tm=4096 (padded-lane sizes, double-buffered):
    #   out  (tm,300->384 lanes) f32 : 2 x 6.0 MiB
    #   x    (tm,5  ->128 lanes) f32 : 2 x 2.0 MiB
    #   activations (each padded to 128 lanes, reused): ~6-8 MiB peak
    #   weights/biases: < 0.5 MiB
    # => ~25 MiB, within the 48 MiB limit below on every generation
    # (v7x has 64 MiB/TC; keep tile_m <= 4096 there).
    b_rounded = _round_up(max(B, 8), 8)
    tm = min(_round_up(tile_m, 8), b_rounded)
    # Prefer >= 2 grid steps whenever the batch allows it: the batch axis is
    # marked "parallel", so a 1-step grid would idle one v7x TensorCore.
    if b_rounded <= tm and b_rounded >= 16:
        tm = _round_up((b_rounded + 1) // 2, 8)
    b_pad = _round_up(B, tm)
    if b_pad != B:
        x = jnp.pad(x, ((0, b_pad - B), (0, 0)))  # zero rows, sliced off below

    (w1, b1), (w2, b2), (w3, b3), (w4, b4), (w5, b5) = params
    if use_bf16:
        w4 = w4.astype(jnp.bfloat16)
        w5 = w5.astype(jnp.bfloat16)

    flat = [w1, b1, w2, b2, w3, b3, w4, b4, w5, b5]

    num_tiles = b_pad // tm
    in_specs = [pl.BlockSpec((tm, LAYER_DIMS[0]), lambda i: (i, 0))]
    # Weights/biases: full-array blocks with a constant index_map, so they are
    # DMA'd once and stay VMEM-resident across all grid steps.
    for p in flat:
        in_specs.append(pl.BlockSpec(p.shape, lambda i: (0, 0)))

    flops = 2 * b_pad * sum(LAYER_DIMS[i] * LAYER_DIMS[i + 1] for i in range(5))
    transcendentals = b_pad * sum(LAYER_DIMS[1:5])  # one tanh per hidden unit
    bytes_accessed = (b_pad * LAYER_DIMS[0] * 4
                      + b_pad * NUM_FTR * jnp.dtype(out_dtype).itemsize
                      + sum(int(p.size) * p.dtype.itemsize for p in flat))

    out = pl.pallas_call(
        _mlp_kernel,
        out_shape=jax.ShapeDtypeStruct((b_pad, NUM_FTR), out_dtype),
        grid=(num_tiles,),
        in_specs=in_specs,
        # Output block covers the full 300 columns (== array extent, so the
        # (8,128) rule is satisfied); no 384-lane HBM padding is written.
        out_specs=pl.BlockSpec((tm, NUM_FTR), lambda i: (i, 0)),
        compiler_params=pltpu.CompilerParams(
            dimension_semantics=("parallel",),  # megacore-shard batch on v7x
            vmem_limit_bytes=48 * 1024 * 1024),
        cost_estimate=pl.CostEstimate(
            flops=flops,
            transcendentals=transcendentals,
            bytes_accessed=bytes_accessed),
    )(x, *flat)

    # Only the row slice remains (output already 300 wide); skip it entirely
    # when no batch padding was needed so no extra HBM copy is materialized.
    return out if b_pad == B else out[:B]


def init_params(key):
    """Deterministic init mimicking PyTorch Linear default (U(-1/sqrt(fan_in), +))."""
    params = []
    for i in range(len(LAYER_DIMS) - 1):
        fan_in, fan_out = LAYER_DIMS[i], LAYER_DIMS[i + 1]
        key, kw, kb = jax.random.split(key, 3)
        bound = 1.0 / jnp.sqrt(fan_in)
        w = jax.random.uniform(kw, (fan_in, fan_out), jnp.float32, -bound, bound)
        b = jax.random.uniform(kb, (1, fan_out), jnp.float32, -bound, bound)
        params.append((w, b))
    return params


def reference_forward(x, params, use_bf16=True):
    """Pure-JAX reference mirroring the kernel's dtype choices."""
    h = x
    n = len(params)
    for i, (w, b) in enumerate(params):
        if use_bf16 and i >= 3:
            h = jnp.dot(h.astype(jnp.bfloat16), w.astype(jnp.bfloat16),
                        preferred_element_type=jnp.float32) + b
        else:
            h = jnp.dot(h, w, preferred_element_type=jnp.float32) + b
        if i < n - 1:
            h = jax.nn.sigmoid(h)
    return h


if __name__ == "__main__":
    key = jax.random.PRNGKey(0)
    key, kx = jax.random.split(key)

    B = 37  # deliberately not a multiple of the batch tile (exercises padding)
    x = jax.random.normal(kx, (B, 5), dtype=jnp.float32)
    params = init_params(key)

    # Small tile so the demo exercises a multi-step grid (48 padded rows / 16 = 3 steps).
    out = nn_regressor_mises_cauchy(x, params, tile_m=16, use_bf16=True)
    out = jax.block_until_ready(out)
    assert out.shape == (B, NUM_FTR), out.shape

    # Also exercise the default (large-tile, auto-split) path once.
    out_big = jax.block_until_ready(nn_regressor_mises_cauchy(x, params))
    assert out_big.shape == (B, NUM_FTR), out_big.shape

    ref_bf16 = reference_forward(x, params, use_bf16=True)   # same dtype path
    ref_f32 = reference_forward(x, params, use_bf16=False)   # full-precision semantics
    assert jnp.allclose(out, ref_bf16, atol=2e-3, rtol=2e-3), \
        float(jnp.max(jnp.abs(out - ref_bf16)))
    assert jnp.allclose(out, ref_f32, atol=5e-2, rtol=5e-2), \
        float(jnp.max(jnp.abs(out - ref_f32)))
    assert jnp.allclose(out_big, out, atol=1e-5, rtol=1e-5), \
        float(jnp.max(jnp.abs(out_big - out)))

    print("KERNEL_OK")
</pallas_src>

<mosaic_0001>
module attributes {stable_mosaic.version = 11 : i64} {
  func.func @_mlp_kernel(%arg0: i32, %arg1: memref<16x5xf32, #tpu.memory_space<vmem>>, %arg2: memref<5x16xf32, #tpu.memory_space<vmem>>, %arg3: memref<1x16xf32, #tpu.memory_space<vmem>>, %arg4: memref<16x32xf32, #tpu.memory_space<vmem>>, %arg5: memref<1x32xf32, #tpu.memory_space<vmem>>, %arg6: memref<32x64xf32, #tpu.memory_space<vmem>>, %arg7: memref<1x64xf32, #tpu.memory_space<vmem>>, %arg8: memref<64x128xbf16, #tpu.memory_space<vmem>>, %arg9: memref<1x128xf32, #tpu.memory_space<vmem>>, %arg10: memref<128x300xbf16, #tpu.memory_space<vmem>>, %arg11: memref<1x300xf32, #tpu.memory_space<vmem>>, %arg12: memref<16x300xf32, #tpu.memory_space<vmem>>) attributes {dimension_semantics = [#tpu.dimension_semantics<parallel>], iteration_bounds = array<i64: 3>, scalar_prefetch = 0 : i64, scratch_operands = 0 : i64, tpu.core_type = #tpu.core_type<tc>, window_params = [{transform_indices = @transform_0, window_bounds = array<i64: 16, 5>}, {pipeline_mode = #tpu.pipeline_mode<synchronous>, transform_indices = @transform_1, window_bounds = array<i64: 5, 16>}, {pipeline_mode = #tpu.pipeline_mode<synchronous>, transform_indices = @transform_2, window_bounds = array<i64: 1, 16>}, {pipeline_mode = #tpu.pipeline_mode<synchronous>, transform_indices = @transform_3, window_bounds = array<i64: 16, 32>}, {pipeline_mode = #tpu.pipeline_mode<synchronous>, transform_indices = @transform_4, window_bounds = array<i64: 1, 32>}, {pipeline_mode = #tpu.pipeline_mode<synchronous>, transform_indices = @transform_5, window_bounds = array<i64: 32, 64>}, {pipeline_mode = #tpu.pipeline_mode<synchronous>, transform_indices = @transform_6, window_bounds = array<i64: 1, 64>}, {pipeline_mode = #tpu.pipeline_mode<synchronous>, transform_indices = @transform_7, window_bounds = array<i64: 64, 128>}, {pipeline_mode = #tpu.pipeline_mode<synchronous>, transform_indices = @transform_8, window_bounds = array<i64: 1, 128>}, {pipeline_mode = #tpu.pipeline_mode<synchronous>, transform_indices = @transform_9, window_bounds = array<i64: 128, 300>}, {pipeline_mode = #tpu.pipeline_mode<synchronous>, transform_indices = @transform_10, window_bounds = array<i64: 1, 300>}, {transform_indices = @transform_11, window_bounds = array<i64: 16, 300>}]} {
    %c0 = arith.constant 0 : index
    %c0_0 = arith.constant 0 : index
    %0 = vector.load %arg1[%c0, %c0_0] : memref<16x5xf32, #tpu.memory_space<vmem>>, vector<16x5xf32>
    %c0_1 = arith.constant 0 : index
    %c0_2 = arith.constant 0 : index
    %1 = vector.load %arg2[%c0_1, %c0_2] : memref<5x16xf32, #tpu.memory_space<vmem>>, vector<5x16xf32>
    %cst = arith.constant dense<0.000000e+00> : vector<16x16xf32>
    %2 = tpu.matmul %0, %1, %cst {dimension_numbers = #tpu.dot_dimension_numbers<[1], [0], [0], [1], [0, 0, 1, 1], [], []>} : vector<16x5xf32>, vector<5x16xf32>, vector<16x16xf32> -> vector<16x16xf32>
    %c0_3 = arith.constant 0 : index
    %c0_4 = arith.constant 0 : index
    %3 = vector.load %arg3[%c0_3, %c0_4] : memref<1x16xf32, #tpu.memory_space<vmem>>, vector<1x16xf32>
    %4 = vector.broadcast %3 : vector<1x16xf32> to vector<16x16xf32>
    %5 = arith.addf %2, %4 : vector<16x16xf32>
    %cst_5 = arith.constant 5.000000e-01 : f32
    %6 = vector.broadcast %cst_5 : f32 to vector<16x16xf32>
    %7 = arith.mulf %6, %5 : vector<16x16xf32>
    %8 = math.tanh %7 : vector<16x16xf32>
    %cst_6 = arith.constant 1.000000e+00 : f32
    %9 = vector.broadcast %cst_6 : f32 to vector<16x16xf32>
    %10 = arith.addf %8, %9 : vector<16x16xf32>
    %cst_7 = arith.constant 5.000000e-01 : f32
    %11 = vector.broadcast %cst_7 : f32 to vector<16x16xf32>
    %12 = arith.mulf %11, %10 : vector<16x16xf32>
    %c0_8 = arith.constant 0 : index
    %c0_9 = arith.constant 0 : index
    %13 = vector.load %arg4[%c0_8, %c0_9] : memref<16x32xf32, #tpu.memory_space<vmem>>, vector<16x32xf32>
    %cst_10 = arith.constant dense<0.000000e+00> : vector<16x32xf32>
    %14 = tpu.matmul %12, %13, %cst_10 {dimension_numbers = #tpu.dot_dimension_numbers<[1], [0], [0], [1], [0, 0, 1, 1], [], []>} : vector<16x16xf32>, vector<16x32xf32>, vector<16x32xf32> -> vector<16x32xf32>
    %c0_11 = arith.constant 0 : index
    %c0_12 = arith.constant 0 : index
    %15 = vector.load %arg5[%c0_11, %c0_12] : memref<1x32xf32, #tpu.memory_space<vmem>>, vector<1x32xf32>
    %16 = vector.broadcast %15 : vector<1x32xf32> to vector<16x32xf32>
    %17 = arith.addf %14, %16 : vector<16x32xf32>
    %cst_13 = arith.constant 5.000000e-01 : f32
    %18 = vector.broadcast %cst_13 : f32 to vector<16x32xf32>
    %19 = arith.mulf %18, %17 : vector<16x32xf32>
    %20 = math.tanh %19 : vector<16x32xf32>
    %cst_14 = arith.constant 1.000000e+00 : f32
    %21 = vector.broadcast %cst_14 : f32 to vector<16x32xf32>
    %22 = arith.addf %20, %21 : vector<16x32xf32>
    %cst_15 = arith.constant 5.000000e-01 : f32
    %23 = vector.broadcast %cst_15 : f32 to vector<16x32xf32>
    %24 = arith.mulf %23, %22 : vector<16x32xf32>
    %c0_16 = arith.constant 0 : index
    %c0_17 = arith.constant 0 : index
    %25 = vector.load %arg6[%c0_16, %c0_17] : memref<32x64xf32, #tpu.memory_space<vmem>>, vector<32x64xf32>
    %cst_18 = arith.constant dense<0.000000e+00> : vector<16x64xf32>
    %26 = tpu.matmul %24, %25, %cst_18 {dimension_numbers = #tpu.dot_dimension_numbers<[1], [0], [0], [1], [0, 0, 1, 1], [], []>} : vector<16x32xf32>, vector<32x64xf32>, vector<16x64xf32> -> vector<16x64xf32>
    %c0_19 = arith.constant 0 : index
    %c0_20 = arith.constant 0 : index
    %27 = vector.load %arg7[%c0_19, %c0_20] : memref<1x64xf32, #tpu.memory_space<vmem>>, vector<1x64xf32>
    %28 = vector.broadcast %27 : vector<1x64xf32> to vector<16x64xf32>
    %29 = arith.addf %26, %28 : vector<16x64xf32>
    %cst_21 = arith.constant 5.000000e-01 : f32
    %30 = vector.broadcast %cst_21 : f32 to vector<16x64xf32>
    %31 = arith.mulf %30, %29 : vector<16x64xf32>
    %32 = math.tanh %31 : vector<16x64xf32>
    %cst_22 = arith.constant 1.000000e+00 : f32
    %33 = vector.broadcast %cst_22 : f32 to vector<16x64xf32>
    %34 = arith.addf %32, %33 : vector<16x64xf32>
    %cst_23 = arith.constant 5.000000e-01 : f32
    %35 = vector.broadcast %cst_23 : f32 to vector<16x64xf32>
    %36 = arith.mulf %35, %34 : vector<16x64xf32>
    %37 = arith.truncf %36 : vector<16x64xf32> to vector<16x64xbf16>
    %c0_24 = arith.constant 0 : index
    %c0_25 = arith.constant 0 : index
    %38 = vector.load %arg8[%c0_24, %c0_25] : memref<64x128xbf16, #tpu.memory_space<vmem>>, vector<64x128xbf16>
    %cst_26 = arith.constant dense<0.000000e+00> : vector<16x128xf32>
    %39 = tpu.matmul %37, %38, %cst_26 {dimension_numbers = #tpu.dot_dimension_numbers<[1], [0], [0], [1], [0, 0, 1, 1], [], []>} : vector<16x64xbf16>, vector<64x128xbf16>, vector<16x128xf32> -> vector<16x128xf32>
    %c0_27 = arith.constant 0 : index
    %c0_28 = arith.constant 0 : index
    %40 = vector.load %arg9[%c0_27, %c0_28] : memref<1x128xf32, #tpu.memory_space<vmem>>, vector<1x128xf32>
    %41 = vector.broadcast %40 : vector<1x128xf32> to vector<16x128xf32>
    %42 = arith.addf %39, %41 : vector<16x128xf32>
    %cst_29 = arith.constant 5.000000e-01 : f32
    %43 = vector.broadcast %cst_29 : f32 to vector<16x128xf32>
    %44 = arith.mulf %43, %42 : vector<16x128xf32>
    %45 = math.tanh %44 : vector<16x128xf32>
    %cst_30 = arith.constant 1.000000e+00 : f32
    %46 = vector.broadcast %cst_30 : f32 to vector<16x128xf32>
    %47 = arith.addf %45, %46 : vector<16x128xf32>
    %cst_31 = arith.constant 5.000000e-01 : f32
    %48 = vector.broadcast %cst_31 : f32 to vector<16x128xf32>
    %49 = arith.mulf %48, %47 : vector<16x128xf32>
    %50 = arith.truncf %49 : vector<16x128xf32> to vector<16x128xbf16>
    %c0_32 = arith.constant 0 : index
    %c0_33 = arith.constant 0 : index
    %51 = vector.load %arg10[%c0_32, %c0_33] : memref<128x300xbf16, #tpu.memory_space<vmem>>, vector<128x300xbf16>
    %cst_34 = arith.constant dense<0.000000e+00> : vector<16x300xf32>
    %52 = tpu.matmul %50, %51, %cst_34 {dimension_numbers = #tpu.dot_dimension_numbers<[1], [0], [0], [1], [0, 0, 1, 1], [], []>} : vector<16x128xbf16>, vector<128x300xbf16>, vector<16x300xf32> -> vector<16x300xf32>
    %c0_35 = arith.constant 0 : index
    %c0_36 = arith.constant 0 : index
    %53 = vector.load %arg11[%c0_35, %c0_36] : memref<1x300xf32, #tpu.memory_space<vmem>>, vector<1x300xf32>
    %54 = vector.broadcast %53 : vector<1x300xf32> to vector<16x300xf32>
    %55 = arith.addf %52, %54 : vector<16x300xf32>
    %c0_37 = arith.constant 0 : index
    %c0_38 = arith.constant 0 : index
    %56 = vector.load %arg12[%c0_37, %c0_38] : memref<16x300xf32, #tpu.memory_space<vmem>>, vector<16x300xf32>
    tpu.vector_store %arg12[%c0_37, %c0_38], %55 {strides = array<i32>} : memref<16x300xf32, #tpu.memory_space<vmem>>, vector<16x300xf32>,
    return
  }
  func.func @transform_0(%arg0: i32) -> (i32, i32) {
    %c0_i32 = arith.constant 0 : i32
    %c0_i32_0 = arith.constant 0 : i32
    return %arg0, %c0_i32 : i32, i32
  }
  func.func @transform_1(%arg0: i32) -> (i32, i32) {
    %c0_i32 = arith.constant 0 : i32
    %c0_i32_0 = arith.constant 0 : i32
    %c0_i32_1 = arith.constant 0 : i32
    return %c0_i32, %c0_i32_0 : i32, i32
  }
  func.func @transform_2(%arg0: i32) -> (i32, i32) {
    %c0_i32 = arith.constant 0 : i32
    %c0_i32_0 = arith.constant 0 : i32
    %c0_i32_1 = arith.constant 0 : i32
    return %c0_i32, %c0_i32_0 : i32, i32
  }
  func.func @transform_3(%arg0: i32) -> (i32, i32) {
    %c0_i32 = arith.constant 0 : i32
    %c0_i32_0 = arith.constant 0 : i32
    %c0_i32_1 = arith.constant 0 : i32
    return %c0_i32, %c0_i32_0 : i32, i32
  }
  func.func @transform_4(%arg0: i32) -> (i32, i32) {
    %c0_i32 = arith.constant 0 : i32
    %c0_i32_0 = arith.constant 0 : i32
    %c0_i32_1 = arith.constant 0 : i32
    return %c0_i32, %c0_i32_0 : i32, i32
  }
  func.func @transform_5(%arg0: i32) -> (i32, i32) {
    %c0_i32 = arith.constant 0 : i32
    %c0_i32_0 = arith.constant 0 : i32
    %c0_i32_1 = arith.constant 0 : i32
    return %c0_i32, %c0_i32_0 : i32, i32
  }
  func.func @transform_6(%arg0: i32) -> (i32, i32) {
    %c0_i32 = arith.constant 0 : i32
    %c0_i32_0 = arith.constant 0 : i32
    %c0_i32_1 = arith.constant 0 : i32
    return %c0_i32, %c0_i32_0 : i32, i32
  }
  func.func @transform_7(%arg0: i32) -> (i32, i32) {
    %c0_i32 = arith.constant 0 : i32
    %c0_i32_0 = arith.constant 0 : i32
    %c0_i32_1 = arith.constant 0 : i32
    return %c0_i32, %c0_i32_0 : i32, i32
  }
  func.func @transform_8(%arg0: i32) -> (i32, i32) {
    %c0_i32 = arith.constant 0 : i32
    %c0_i32_0 = arith.constant 0 : i32
    %c0_i32_1 = arith.constant 0 : i32
    return %c0_i32, %c0_i32_0 : i32, i32
  }
  func.func @transform_9(%arg0: i32) -> (i32, i32) {
    %c0_i32 = arith.constant 0 : i32
    %c0_i32_0 = arith.constant 0 : i32
    %c0_i32_1 = arith.constant 0 : i32
    return %c0_i32, %c0_i32_0 : i32, i32
  }
  func.func @transform_10(%arg0: i32) -> (i32, i32) {
    %c0_i32 = arith.constant 0 : i32
    %c0_i32_0 = arith.constant 0 : i32
    %c0_i32_1 = arith.constant 0 : i32
    return %c0_i32, %c0_i32_0 : i32, i32
  }
  func.func @transform_11(%arg0: i32) -> (i32, i32) {
    %c0_i32 = arith.constant 0 : i32
    %c0_i32_0 = arith.constant 0 : i32
    return %arg0, %c0_i32 : i32, i32
  }
}

</mosaic_0001>

<llo_original>
// kernel: tpu_custom_call.1
$region0: #{tpu_custom_call.1}
  #allocation0 [shape = 'u32[]', space=smem, size = 0x4, offset = 0x4, fixed_abs, tag = 'smem constant byte address 0x4 - core index']
  #allocation1 [shape = 'u32[144,128]{1,0:T(1,128)}', space=vmem, size = 0x12000, scoped, tag = 'internal scratch']
  %s0 = inlined_call_operand.vmem [shape: f32[48,5], index: 0, kind: input, shape index: {}]
  %s1 = inlined_call_operand.vmem [shape: f32[5,16], index: 1, kind: input, shape index: {}]
  %s2 = inlined_call_operand.vmem [shape: f32[1,16], index: 2, kind: input, shape index: {}]
  %s3 = inlined_call_operand.vmem [shape: f32[16,32], index: 3, kind: input, shape index: {}]
  %s4 = inlined_call_operand.vmem [shape: f32[1,32], index: 4, kind: input, shape index: {}]
  %s5 = inlined_call_operand.vmem [shape: f32[32,64], index: 5, kind: input, shape index: {}]
  %s6 = inlined_call_operand.vmem [shape: f32[1,64], index: 6, kind: input, shape index: {}]
  %s7 = inlined_call_operand.vmem [shape: bf16[64,128], index: 7, kind: input, shape index: {}]
  %s8 = inlined_call_operand.vmem [shape: f32[1,128], index: 8, kind: input, shape index: {}]
  %s9 = inlined_call_operand.vmem [shape: bf16[128,300], index: 9, kind: input, shape index: {}]
  %s10 = inlined_call_operand.vmem [shape: f32[1,300], index: 10, kind: input, shape index: {}]
  %s11 = inlined_call_operand.hbm [shape: f32[48,300], index: 11, kind: output, shape index: {}]
  %s12 = sld [smem:[#allocation0]]
  $region77: #{tpu_custom_call.1} parent=0
    _
  %s14 = ssub.s32 1, %s12
  %s15 = scalar_select 0, %s14, %s12
  $region1: #{tpu_custom_call.1} parent=0
    #allocation2 [shape = 'u8[49152]{0}', space=vmem, size = 0xc000, scoped, tag = 'output window, operand 0']
    #allocation3 [shape = 's32[2]{0}', space=sflag, size = 0x8, scoped, tag = 'scoped memory for tpu_custom_call.1']
    %16 = vsyncpa [#allocation3], 0
    %s17 = scalar_lea.sflag [#allocation3], 1
    %18 = vsyncpa %s17, 0
    loop: start=0, step=1, limit=5
    $region2: #{tpu_custom_call.1} parent=1 // loop_pre_header
      _
    $region3: #{tpu_custom_call.1} parent=1 // loop_header
      %s20 = sphi 0, %s24
      %p21 = scmp.ge.s32.totalorder %s20, 5
      %s30 = sphi 0, %s32
      %s33 = sphi 0, %s30
      %s34 = sphi 0, %s33
      %s50 = sphi 0, %s34
      %s54 = sphi 0, %s54
      %s56 = sphi 0, %s54
      %s57 = sphi 0, %s56
      %s71 = sphi 0, %s57
      %s75 = sphi 0, %s75
      %s77 = sphi 0, %s75
      %s78 = sphi 0, %s77
      %s92 = sphi 0, %s78
      %s96 = sphi 0, %s96
      %s98 = sphi 0, %s96
      %s99 = sphi 0, %s98
      %s113 = sphi 0, %s99
      %s117 = sphi 0, %s117
      %s119 = sphi 0, %s117
      %s120 = sphi 0, %s119
      %s134 = sphi 0, %s120
      %s138 = sphi 0, %s138
      %s140 = sphi 0, %s138
      %s141 = sphi 0, %s140
      %s155 = sphi 0, %s141
      %s159 = sphi 0, %s159
      %s161 = sphi 0, %s159
      %s162 = sphi 0, %s161
      %s176 = sphi 0, %s162
      %s180 = sphi 0, %s180
      %s182 = sphi 0, %s180
      %s183 = sphi 0, %s182
      %s197 = sphi 0, %s183
      %s201 = sphi 0, %s201
      %s203 = sphi 0, %s201
      %s204 = sphi 0, %s203
      %s218 = sphi 0, %s204
      %s222 = sphi 0, %s222
      %s224 = sphi 0, %s222
      %s225 = sphi 0, %s224
      %s239 = sphi 0, %s225
      %s243 = sphi 0, %s243
      %s245 = sphi 0, %s243
      %s246 = sphi 0, %s245
      %s260 = sphi 0, %s246
      %s266 = sphi 0, %s268
      %s269 = sphi 0, %s266
      %s270 = sphi 0, %s269
      %s286 = sphi 0, %s270
    $region4: #{tpu_custom_call.1} parent=1 // loop_header_branch
      %23 = sbr.rel (%p21) target = $region8
    $region5: #{tpu_custom_call.1} parent=1 // loop_body
      %s25 = ssub.s32 %s20, 1
      %s26 = ssub.s32 %s20, 2
      %s27 = sadd.s32 %s20, 1
      %s28 = ssub.s32 %s20, %s27
      %p29 = scmp.eq.s32.totalorder %s28, 0
      %s31 = sadd.s32 %s30, 1
      %s32 = scalar_select %p29, %s30, %s31
      %p35 = pneg %p29
      %p36 = scmp.eq.s32.totalorder %s20, 2
      %p37 = por %p35, %p36
      %p38 = scmp.ne.s32.totalorder %s30, %s33
      %p39 = scmp.eq.s32.totalorder %s20, 0
      %p40 = por %p38, %p39
      %p41 = scmp.ne.s32.totalorder %s30, %s33
      %p42 = scmp.eq.s32.totalorder %s25, 2
      %p43 = por %p41, %p42
      %p44 = scmp.ne.s32.totalorder %s33, %s34
      %p45 = scmp.eq.s32.totalorder %s25, 0
      %p46 = por %p44, %p45
      %p47 = scmp.ne.s32.totalorder %s33, %s34
      %p48 = scmp.eq.s32.totalorder %s26, 2
      %p49 = por %p47, %p48
      %p51 = scmp.ne.s32.totalorder %s34, %s50
      %p52 = scmp.eq.s32.totalorder %s26, 0
      %p53 = por %p51, %p52
      %s55 = sadd.s32 %s54, 1
      %p58 = scmp.eq.s32.totalorder %s20, 2
      %p59 = scmp.ne.s32.totalorder %s54, %s56
      %p60 = scmp.eq.s32.totalorder %s20, 0
      %p61 = por %p59, %p60
      %p62 = scmp.ne.s32.totalorder %s54, %s56
      %p63 = scmp.eq.s32.totalorder %s25, 2
      %p64 = por %p62, %p63
      %p65 = scmp.ne.s32.totalorder %s56, %s57
      %p66 = scmp.eq.s32.totalorder %s25, 0
      %p67 = por %p65, %p66
      %p68 = scmp.ne.s32.totalorder %s56, %s57
      %p69 = scmp.eq.s32.totalorder %s26, 2
      %p70 = por %p68, %p69
      %p72 = scmp.ne.s32.totalorder %s57, %s71
      %p73 = scmp.eq.s32.totalorder %s26, 0
      %p74 = por %p72, %p73
      %s76 = sadd.s32 %s75, 1
      %p79 = scmp.eq.s32.totalorder %s20, 2
      %p80 = scmp.ne.s32.totalorder %s75, %s77
      %p81 = scmp.eq.s32.totalorder %s20, 0
      %p82 = por %p80, %p81
      %p83 = scmp.ne.s32.totalorder %s75, %s77
      %p84 = scmp.eq.s32.totalorder %s25, 2
      %p85 = por %p83, %p84
      %p86 = scmp.ne.s32.totalorder %s77, %s78
      %p87 = scmp.eq.s32.totalorder %s25, 0
      %p88 = por %p86, %p87
      %p89 = scmp.ne.s32.totalorder %s77, %s78
      %p90 = scmp.eq.s32.totalorder %s26, 2
      %p91 = por %p89, %p90
      %p93 = scmp.ne.s32.totalorder %s78, %s92
      %p94 = scmp.eq.s32.totalorder %s26, 0
      %p95 = por %p93, %p94
      %s97 = sadd.s32 %s96, 1
      %p100 = scmp.eq.s32.totalorder %s20, 2
      %p101 = scmp.ne.s32.totalorder %s96, %s98
      %p102 = scmp.eq.s32.totalorder %s20, 0
      %p103 = por %p101, %p102
      %p104 = scmp.ne.s32.totalorder %s96, %s98
      %p105 = scmp.eq.s32.totalorder %s25, 2
      %p106 = por %p104, %p105
      %p107 = scmp.ne.s32.totalorder %s98, %s99
      %p108 = scmp.eq.s32.totalorder %s25, 0
      %p109 = por %p107, %p108
      %p110 = scmp.ne.s32.totalorder %s98, %s99
      %p111 = scmp.eq.s32.totalorder %s26, 2
      %p112 = por %p110, %p111
      %p114 = scmp.ne.s32.totalorder %s99, %s113
      %p115 = scmp.eq.s32.totalorder %s26, 0
      %p116 = por %p114, %p115
      %s118 = sadd.s32 %s117, 1
      %p121 = scmp.eq.s32.totalorder %s20, 2
      %p122 = scmp.ne.s32.totalorder %s117, %s119
      %p123 = scmp.eq.s32.totalorder %s20, 0
      %p124 = por %p122, %p123
      %p125 = scmp.ne.s32.totalorder %s117, %s119
      %p126 = scmp.eq.s32.totalorder %s25, 2
      %p127 = por %p125, %p126
      %p128 = scmp.ne.s32.totalorder %s119, %s120
      %p129 = scmp.eq.s32.totalorder %s25, 0
      %p130 = por %p128, %p129
      %p131 = scmp.ne.s32.totalorder %s119, %s120
      %p132 = scmp.eq.s32.totalorder %s26, 2
      %p133 = por %p131, %p132
      %p135 = scmp.ne.s32.totalorder %s120, %s134
      %p136 = scmp.eq.s32.totalorder %s26, 0
      %p137 = por %p135, %p136
      %s139 = sadd.s32 %s138, 1
      %p142 = scmp.eq.s32.totalorder %s20, 2
      %p143 = scmp.ne.s32.totalorder %s138, %s140
      %p144 = scmp.eq.s32.totalorder %s20, 0
      %p145 = por %p143, %p144
      %p146 = scmp.ne.s32.totalorder %s138, %s140
      %p147 = scmp.eq.s32.totalorder %s25, 2
      %p148 = por %p146, %p147
      %p149 = scmp.ne.s32.totalorder %s140, %s141
      %p150 = scmp.eq.s32.totalorder %s25, 0
      %p151 = por %p149, %p150
      %p152 = scmp.ne.s32.totalorder %s140, %s141
      %p153 = scmp.eq.s32.totalorder %s26, 2
      %p154 = por %p152, %p153
      %p156 = scmp.ne.s32.totalorder %s141, %s155
      %p157 = scmp.eq.s32.totalorder %s26, 0
      %p158 = por %p156, %p157
      %s160 = sadd.s32 %s159, 1
      %p163 = scmp.eq.s32.totalorder %s20, 2
      %p164 = scmp.ne.s32.totalorder %s159, %s161
      %p165 = scmp.eq.s32.totalorder %s20, 0
      %p166 = por %p164, %p165
      %p167 = scmp.ne.s32.totalorder %s159, %s161
      %p168 = scmp.eq.s32.totalorder %s25, 2
      %p169 = por %p167, %p168
      %p170 = scmp.ne.s32.totalorder %s161, %s162
      %p171 = scmp.eq.s32.totalorder %s25, 0
      %p172 = por %p170, %p171
      %p173 = scmp.ne.s32.totalorder %s161, %s162
      %p174 = scmp.eq.s32.totalorder %s26, 2
      %p175 = por %p173, %p174
      %p177 = scmp.ne.s32.totalorder %s162, %s176
      %p178 = scmp.eq.s32.totalorder %s26, 0
      %p179 = por %p177, %p178
      %s181 = sadd.s32 %s180, 1
      %p184 = scmp.eq.s32.totalorder %s20, 2
      %p185 = scmp.ne.s32.totalorder %s180, %s182
      %p186 = scmp.eq.s32.totalorder %s20, 0
      %p187 = por %p185, %p186
      %p188 = scmp.ne.s32.totalorder %s180, %s182
      %p189 = scmp.eq.s32.totalorder %s25, 2
      %p190 = por %p188, %p189
      %p191 = scmp.ne.s32.totalorder %s182, %s183
      %p192 = scmp.eq.s32.totalorder %s25, 0
      %p193 = por %p191, %p192
      %p194 = scmp.ne.s32.totalorder %s182, %s183
      %p195 = scmp.eq.s32.totalorder %s26, 2
      %p196 = por %p194, %p195
      %p198 = scmp.ne.s32.totalorder %s183, %s197
      %p199 = scmp.eq.s32.totalorder %s26, 0
      %p200 = por %p198, %p199
      %s202 = sadd.s32 %s201, 1
      %p205 = scmp.eq.s32.totalorder %s20, 2
      %p206 = scmp.ne.s32.totalorder %s201, %s203
      %p207 = scmp.eq.s32.totalorder %s20, 0
      %p208 = por %p206, %p207
      %p209 = scmp.ne.s32.totalorder %s201, %s203
      %p210 = scmp.eq.s32.totalorder %s25, 2
      %p211 = por %p209, %p210
      %p212 = scmp.ne.s32.totalorder %s203, %s204
      %p213 = scmp.eq.s32.totalorder %s25, 0
      %p214 = por %p212, %p213
      %p215 = scmp.ne.s32.totalorder %s203, %s204
      %p216 = scmp.eq.s32.totalorder %s26, 2
      %p217 = por %p215, %p216
      %p219 = scmp.ne.s32.totalorder %s204, %s218
      %p220 = scmp.eq.s32.totalorder %s26, 0
      %p221 = por %p219, %p220
      %s223 = sadd.s32 %s222, 1
      %p226 = scmp.eq.s32.totalorder %s20, 2
      %p227 = scmp.ne.s32.totalorder %s222, %s224
      %p228 = scmp.eq.s32.totalorder %s20, 0
      %p229 = por %p227, %p228
      %p230 = scmp.ne.s32.totalorder %s222, %s224
      %p231 = scmp.eq.s32.totalorder %s25, 2
      %p232 = por %p230, %p231
      %p233 = scmp.ne.s32.totalorder %s224, %s225
      %p234 = scmp.eq.s32.totalorder %s25, 0
      %p235 = por %p233, %p234
      %p236 = scmp.ne.s32.totalorder %s224, %s225
      %p237 = scmp.eq.s32.totalorder %s26, 2
      %p238 = por %p236, %p237
      %p240 = scmp.ne.s32.totalorder %s225, %s239
      %p241 = scmp.eq.s32.totalorder %s26, 0
      %p242 = por %p240, %p241
      %s244 = sadd.s32 %s243, 1
      %p247 = scmp.eq.s32.totalorder %s20, 2
      %p248 = scmp.ne.s32.totalorder %s243, %s245
      %p249 = scmp.eq.s32.totalorder %s20, 0
      %p250 = por %p248, %p249
      %p251 = scmp.ne.s32.totalorder %s243, %s245
      %p252 = scmp.eq.s32.totalorder %s25, 2
      %p253 = por %p251, %p252
      %p254 = scmp.ne.s32.totalorder %s245, %s246
      %p255 = scmp.eq.s32.totalorder %s25, 0
      %p256 = por %p254, %p255
      %p257 = scmp.ne.s32.totalorder %s245, %s246
      %p258 = scmp.eq.s32.totalorder %s26, 2
      %p259 = por %p257, %p258
      %p261 = scmp.ne.s32.totalorder %s246, %s260
      %p262 = scmp.eq.s32.totalorder %s26, 0
      %p263 = por %p261, %p262
      %s264 = ssub.s32 %s20, %s27
      %p265 = scmp.eq.s32.totalorder %s264, 0
      %s267 = sadd.s32 %s266, 1
      %s268 = scalar_select %p265, %s266, %s267
      %p271 = pneg %p265
      %p272 = scmp.eq.s32.totalorder %s20, 2
      %p273 = por %p271, %p272
      %p274 = scmp.ne.s32.totalorder %s266, %s269
      %p275 = scmp.eq.s32.totalorder %s20, 0
      %p276 = por %p274, %p275
      %p277 = scmp.ne.s32.totalorder %s266, %s269
      %p278 = scmp.eq.s32.totalorder %s25, 2
      %p279 = por %p277, %p278
      %p280 = scmp.ne.s32.totalorder %s269, %s270
      %p281 = scmp.eq.s32.totalorder %s25, 0
      %p282 = por %p280, %p281
      %p283 = scmp.ne.s32.totalorder %s269, %s270
      %p284 = scmp.eq.s32.totalorder %s26, 2
      %p285 = por %p283, %p284
      %p287 = scmp.ne.s32.totalorder %s270, %s286
      %p288 = scmp.eq.s32.totalorder %s26, 0
      %p289 = por %p287, %p288
      %p290 = scmp.le.s32.totalorder 1, %s20
      %p291 = scmp.lt.s32.totalorder %s20, 4
      %p292 = pnand %p290, %p291
      %p293 = pneg %p292
      // Predicated region
      $region9: #{tpu_custom_call.1} parent=5 // pred_check
        _
      $region10: #{tpu_custom_call.1} parent=5 // pred_check_branch
        %295 = sbr.rel (%p292) target = $region12
      $region11: #{tpu_custom_call.1} parent=5 // pred_region
        %s296 = ssub.s32 %s20, 1
        // Predicated region
        $region13: #{tpu_custom_call.1} parent=11 // pred_check
          %p297 = pneg %p67
        $region14: #{tpu_custom_call.1} parent=11 // pred_check_branch
          %299 = sbr.rel (%p297) target = $region16
        $region15: #{tpu_custom_call.1} parent=11 // pred_region
          _
        $region16: #{tpu_custom_call.1} parent=11 // pred_fallthru
          _
        // Predicated region
        $region17: #{tpu_custom_call.1} parent=11 // pred_check
          %p300 = pneg %p88
        $region18: #{tpu_custom_call.1} parent=11 // pred_check_branch
          %302 = sbr.rel (%p300) target = $region20
        $region19: #{tpu_custom_call.1} parent=11 // pred_region
          _
        $region20: #{tpu_custom_call.1} parent=11 // pred_fallthru
          _
        // Predicated region
        $region21: #{tpu_custom_call.1} parent=11 // pred_check
          %p303 = pneg %p109
        $region22: #{tpu_custom_call.1} parent=11 // pred_check_branch
          %305 = sbr.rel (%p303) target = $region24
        $region23: #{tpu_custom_call.1} parent=11 // pred_region
          _
        $region24: #{tpu_custom_call.1} parent=11 // pred_fallthru
          _
        // Predicated region
        $region25: #{tpu_custom_call.1} parent=11 // pred_check
          %p306 = pneg %p130
        $region26: #{tpu_custom_call.1} parent=11 // pred_check_branch
          %308 = sbr.rel (%p306) target = $region28
        $region27: #{tpu_custom_call.1} parent=11 // pred_region
          _
        $region28: #{tpu_custom_call.1} parent=11 // pred_fallthru
          _
        // Predicated region
        $region29: #{tpu_custom_call.1} parent=11 // pred_check
          %p309 = pneg %p151
        $region30: #{tpu_custom_call.1} parent=11 // pred_check_branch
          %311 = sbr.rel (%p309) target = $region32
        $region31: #{tpu_custom_call.1} parent=11 // pred_region
          _
        $region32: #{tpu_custom_call.1} parent=11 // pred_fallthru
          _
        // Predicated region
        $region33: #{tpu_custom_call.1} parent=11 // pred_check
          %p312 = pneg %p172
        $region34: #{tpu_custom_call.1} parent=11 // pred_check_branch
          %314 = sbr.rel (%p312) target = $region36
        $region35: #{tpu_custom_call.1} parent=11 // pred_region
          _
        $region36: #{tpu_custom_call.1} parent=11 // pred_fallthru
          _
        // Predicated region
        $region37: #{tpu_custom_call.1} parent=11 // pred_check
          %p315 = pneg %p193
        $region38: #{tpu_custom_call.1} parent=11 // pred_check_branch
          %317 = sbr.rel (%p315) target = $region40
        $region39: #{tpu_custom_call.1} parent=11 // pred_region
          _
        $region40: #{tpu_custom_call.1} parent=11 // pred_fallthru
          _
        // Predicated region
        $region41: #{tpu_custom_call.1} parent=11 // pred_check
          %p318 = pneg %p214
        $region42: #{tpu_custom_call.1} parent=11 // pred_check_branch
          %320 = sbr.rel (%p318) target = $region44
        $region43: #{tpu_custom_call.1} parent=11 // pred_region
          _
        $region44: #{tpu_custom_call.1} parent=11 // pred_fallthru
          _
        // Predicated region
        $region45: #{tpu_custom_call.1} parent=11 // pred_check
          %p321 = pneg %p235
        $region46: #{tpu_custom_call.1} parent=11 // pred_check_branch
          %323 = sbr.rel (%p321) target = $region48
        $region47: #{tpu_custom_call.1} parent=11 // pred_region
          _
        $region48: #{tpu_custom_call.1} parent=11 // pred_fallthru
          _
        // Predicated region
        $region49: #{tpu_custom_call.1} parent=11 // pred_check
          %p324 = pneg %p256
        $region50: #{tpu_custom_call.1} parent=11 // pred_check_branch
          %326 = sbr.rel (%p324) target = $region52
        $region51: #{tpu_custom_call.1} parent=11 // pred_region
          _
        $region52: #{tpu_custom_call.1} parent=11 // pred_fallthru
          _
      $region12: #{tpu_custom_call.1} parent=5 // pred_fallthru
        _
      %p327 = scmp.lt.s32.totalorder %s20, 3
      // Predicated region
      $region53: #{tpu_custom_call.1} parent=5 // pred_check
        %p328 = pneg %p327
      $region54: #{tpu_custom_call.1} parent=5 // pred_check_branch
        %330 = sbr.rel (%p328) target = $region56
      $region55: #{tpu_custom_call.1} parent=5 // pred_region
        // Predicated region
        $region57: #{tpu_custom_call.1} parent=55 // pred_check
          %p331 = pneg %p40
        $region58: #{tpu_custom_call.1} parent=55 // pred_check_branch
          %333 = sbr.rel (%p331) target = $region60
        $region59: #{tpu_custom_call.1} parent=55 // pred_region
          %s334 = smul.u32 2, %s20
          %p335 = scmp.lt.s32.totalorder %s334, 5
          %s336 = scalar_select %p335, %s334, 5
          %s337 = smul.addr %s336, 8
          %s338 = scalar_lea.vmem %s0, %s337
          %s339 = smul.u32 2, %s20
        $region60: #{tpu_custom_call.1} parent=55 // pred_fallthru
          _
      $region56: #{tpu_custom_call.1} parent=5 // pred_fallthru
        _
      %p340 = scmp.le.s32.totalorder 1, %s20
      %p341 = scmp.lt.s32.totalorder %s20, 4
      %p342 = pnand %p340, %p341
      %p343 = pneg %p342
      // Predicated region
      $region61: #{tpu_custom_call.1} parent=5 // pred_check
        _
      $region62: #{tpu_custom_call.1} parent=5 // pred_check_branch
        %345 = sbr.rel (%p342) target = $region64
      $region63: #{tpu_custom_call.1} parent=5 // pred_region
        %s346 = ssub.s32 %s20, 1
        %s347 = smul.u32 2, %s25
        %p348 = scmp.lt.s32.totalorder %s347, 5
        %s349 = scalar_select %p348, %s347, 5
        %s350 = smul.addr %s349, 8
        %s351 = scalar_lea.vmem %s0, %s350
        %p352 = pneg %p46
        %p353 = pneg %p43
        %p354 = pneg %p67
        %p355 = pneg %p64
        %p356 = pneg %p88
        %p357 = pneg %p85
        %p358 = pneg %p109
        %p359 = pneg %p106
        %p360 = pneg %p130
        %p361 = pneg %p127
        %p362 = pneg %p151
        %p363 = pneg %p148
        %p364 = pneg %p172
        %p365 = pneg %p169
        %p366 = pneg %p193
        %p367 = pneg %p190
        %p368 = pneg %p214
        %p369 = pneg %p211
        %p370 = pneg %p235
        %p371 = pneg %p232
        %p372 = pneg %p256
        %p373 = pneg %p253
        %p374 = pneg %p282
        %p375 = pneg %p279
        %s376 = sand.u32 %s269, 1
        %s377 = scalar_lea.sflag [#allocation3], %s376
        %s378 = sand.u32 %s269, 1
        %s379 = smul.addr %s378, 48
        %s380 = scalar_lea.vmem [#allocation2], %s379
        %s381 = smul.u32 2, %s25
        %p382 = scmp.lt.s32.totalorder %s381, 5
        %s383 = scalar_select %p382, %s381, 5
        %s384 = smul.addr %s383, 8
        %s385 = scalar_lea.vmem %s0, %s384
        %s386 = smul.u32 2, %s25
        %s387 = smul.u32 2, %s25
        %v389 = vld [vmem:[%s385] sm:$0xff]
        %v390 = vld [vmem:[%s385 + $0x8] sm:$0xff]
        %v391 = vld [vmem:[%s1] sm:$0x1f]
        %v392 = vld [vmem:[%s2] sm:$0x1]
        %v394 = vlaneseq
        %v395 = vshrl.u32 %v394, 7
        %v396 = vsub.s32 0, %v395
        %v397 = vrot.slane %v392, %v396
        %vm399 = vcmask 39936
        %v401 = vsel %vm399, %v389, 0
        %v404 = vsel %vm399, %v390, 0
        %vm406 = vcmask 1044480
        %v408 = vsel %vm406, %v391, 0
        %410 = vmatprep.subr.mxu0 0.0
        %411 = vmatpush1.msra.mxu0 0.0
        %412 = vmatprep.subr.mxu0 0.0
        %413 = vmatpush1.msra.mxu0 0.0
        %414 = vmatprep.subr.mxu0 0.0
        %415 = vmatpush1.msra.mxu0 0.0
        %416 = vmatprep.subr.mxu0 0.0
        %417 = vmatpush1.msra.mxu0 0.0
        %418 = vmatprep.subr.mxu0 0.0
        %419 = vmatpush1.msra.mxu0 0.0
        %420 = vmatprep.subr.mxu0 0.0
        %421 = vmatpush1.msra.mxu0 0.0
        %422 = vmatprep.subr.mxu0 0.0
        %423 = vmatpush1.msra.mxu0 0.0
        %424 = vmatprep.subr.mxu0 0.0
        %425 = vmatpush1.msra.mxu0 0.0
        %426 = vmatprep.subr.mxu0 0.0
        %427 = vmatpush1.msra.mxu0 0.0
        %428 = vmatprep.subr.mxu0 0.0
        %429 = vmatpush1.msra.mxu0 0.0
        %430 = vmatprep.subr.mxu0 0.0
        %431 = vmatpush1.msra.mxu0 0.0
        %432 = vmatprep.subr.mxu0 0.0
        %433 = vmatpush1.msra.mxu0 0.0
        %434 = vmatprep.subr.mxu0 0.0
        %435 = vmatpush1.msra.mxu0 0.0
        %436 = vmatprep.subr.mxu0 0.0
        %437 = vmatpush1.msra.mxu0 0.0
        %438 = vmatprep.subr.mxu0 0.0
        %439 = vmatpush1.msra.mxu0 0.0
        %440 = vmatprep.subr.mxu0 0.0
        %441 = vmatpush1.msra.mxu0 %v408
        %442 = vmatprep.subr.mxu0 0.0
        %443 = vmatpush2.msra.mxu0 0.0
        %444 = vmatprep.subr.mxu0 0.0
        %445 = vmatpush2.msra.mxu0 0.0
        %446 = vmatprep.subr.mxu0 0.0
        %447 = vmatpush2.msra.mxu0 0.0
        %448 = vmatprep.subr.mxu0 0.0
        %449 = vmatpush2.msra.mxu0 0.0
        %450 = vmatprep.subr.mxu0 0.0
        %451 = vmatpush2.msra.mxu0 0.0
        %452 = vmatprep.subr.mxu0 0.0
        %453 = vmatpush2.msra.mxu0 0.0
        %454 = vmatprep.subr.mxu0 0.0
        %455 = vmatpush2.msra.mxu0 0.0
        %456 = vmatprep.subr.mxu0 0.0
        %457 = vmatpush2.msra.mxu0 0.0
        %458 = vmatprep.subr.mxu0 0.0
        %459 = vmatpush2.msra.mxu0 0.0
        %460 = vmatprep.subr.mxu0 0.0
        %461 = vmatpush2.msra.mxu0 0.0
        %462 = vmatprep.subr.mxu0 0.0
        %463 = vmatpush2.msra.mxu0 0.0
        %464 = vmatprep.subr.mxu0 0.0
        %465 = vmatpush2.msra.mxu0 0.0
        %466 = vmatprep.subr.mxu0 0.0
        %467 = vmatpush2.msra.mxu0 0.0
        %468 = vmatprep.subr.mxu0 0.0
        %469 = vmatpush2.msra.mxu0 0.0
        %470 = vmatprep.subr.mxu0 0.0
        %471 = vmatpush2.msra.mxu0 0.0
        %472 = vmatprep.subr.mxu0 0.0
        %473 = vmatpush2.msra.mxu0 0.0
        %474 = vmatprep.mubr.f32.mxu0 0.0
        %475 = vmatmul.mubr.f32.gmra.mxu0 %v401
        %v476 = vpop.f32.mrf.mxu0
        %v477 = vadd.f32 %v397, %v476
        %v478 = vpop.f32.mrf.mxu0
        %479 = vmatprep.mubr.f32.mxu0 0.0
        %480 = vmatmul.mubr.f32.gmra.mxu0 %v404
        %v481 = vpop.f32.mrf.mxu0
        %v482 = vadd.f32 %v397, %v481
        %v483 = vpop.f32.mrf.mxu0
        %484 = vdwg.mxu0
        %v485 = vmul.f32 %v477, 0.5
        %v486 = vmul.f32 %v482, 0.5
        %v487 = vtanh.pop %v485
        %v488 = vtanh.pop %v486
        %v489 = vadd.f32 %v487, 1.0
        %v490 = vadd.f32 %v488, 1.0
        %v491 = vmul.f32 %v489, 0.5
        %v492 = vmul.f32 %v490, 0.5
        %v493 = vld [vmem:[%s3] sm:$0xff]
        %v494 = vld [vmem:[%s3 + $0x8] sm:$0xff]
        %v495 = vld [vmem:[%s4] sm:$0x1]
        %v497 = vlaneseq
        %v498 = vshrl.u32 %v497, 7
        %v499 = vsub.s32 0, %v498
        %v500 = vrot.slane %v495, %v499
        %vm502 = vcmask 130048
        %v504 = vsel %vm502, %v491, 0
        %v507 = vsel %vm502, %v492, 0
        %509 = vmatprep.subr.mxu0 0.0
        %510 = vmatpush1.msra.mxu0 0.0
        %511 = vmatprep.subr.mxu0 0.0
        %512 = vmatpush1.msra.mxu0 0.0
        %513 = vmatprep.subr.mxu0 0.0
        %514 = vmatpush1.msra.mxu0 0.0
        %515 = vmatprep.subr.mxu0 0.0
        %516 = vmatpush1.msra.mxu0 0.0
        %517 = vmatprep.subr.mxu0 0.0
        %518 = vmatpush1.msra.mxu0 0.0
        %519 = vmatprep.subr.mxu0 0.0
        %520 = vmatpush1.msra.mxu0 0.0
        %521 = vmatprep.subr.mxu0 0.0
        %522 = vmatpush1.msra.mxu0 0.0
        %523 = vmatprep.subr.mxu0 0.0
        %524 = vmatpush1.msra.mxu0 0.0
        %525 = vmatprep.subr.mxu0 0.0
        %526 = vmatpush1.msra.mxu0 0.0
        %527 = vmatprep.subr.mxu0 0.0
        %528 = vmatpush1.msra.mxu0 0.0
        %529 = vmatprep.subr.mxu0 0.0
        %530 = vmatpush1.msra.mxu0 0.0
        %531 = vmatprep.subr.mxu0 0.0
        %532 = vmatpush1.msra.mxu0 0.0
        %533 = vmatprep.subr.mxu0 0.0
        %534 = vmatpush1.msra.mxu0 0.0
        %535 = vmatprep.subr.mxu0 0.0
        %536 = vmatpush1.msra.mxu0 0.0
        %537 = vmatprep.subr.mxu0 0.0
        %538 = vmatpush1.msra.mxu0 %v494
        %539 = vmatprep.subr.mxu0 0.0
        %540 = vmatpush1.msra.mxu0 %v493
        %541 = vmatprep.subr.mxu0 0.0
        %542 = vmatpush2.msra.mxu0 0.0
        %543 = vmatprep.subr.mxu0 0.0
        %544 = vmatpush2.msra.mxu0 0.0
        %545 = vmatprep.subr.mxu0 0.0
        %546 = vmatpush2.msra.mxu0 0.0
        %547 = vmatprep.subr.mxu0 0.0
        %548 = vmatpush2.msra.mxu0 0.0
        %549 = vmatprep.subr.mxu0 0.0
        %550 = vmatpush2.msra.mxu0 0.0
        %551 = vmatprep.subr.mxu0 0.0
        %552 = vmatpush2.msra.mxu0 0.0
        %553 = vmatprep.subr.mxu0 0.0
        %554 = vmatpush2.msra.mxu0 0.0
        %555 = vmatprep.subr.mxu0 0.0
        %556 = vmatpush2.msra.mxu0 0.0
        %557 = vmatprep.subr.mxu0 0.0
        %558 = vmatpush2.msra.mxu0 0.0
        %559 = vmatprep.subr.mxu0 0.0
        %560 = vmatpush2.msra.mxu0 0.0
        %561 = vmatprep.subr.mxu0 0.0
        %562 = vmatpush2.msra.mxu0 0.0
        %563 = vmatprep.subr.mxu0 0.0
        %564 = vmatpush2.msra.mxu0 0.0
        %565 = vmatprep.subr.mxu0 0.0
        %566 = vmatpush2.msra.mxu0 0.0
        %567 = vmatprep.subr.mxu0 0.0
        %568 = vmatpush2.msra.mxu0 0.0
        %569 = vmatprep.subr.mxu0 0.0
        %570 = vmatpush2.msra.mxu0 0.0
        %571 = vmatprep.subr.mxu0 0.0
        %572 = vmatpush2.msra.mxu0 0.0
        %573 = vmatprep.mubr.f32.mxu0 0.0
        %574 = vmatmul.mubr.f32.gmra.mxu0 %v504
        %v575 = vpop.f32.mrf.mxu0
        %v576 = vadd.f32 %v500, %v575
        %v577 = vpop.f32.mrf.mxu0
        %578 = vmatprep.mubr.f32.mxu0 0.0
        %579 = vmatmul.mubr.f32.gmra.mxu0 %v507
        %v580 = vpop.f32.mrf.mxu0
        %v581 = vadd.f32 %v500, %v580
        %v582 = vpop.f32.mrf.mxu0
        %583 = vdwg.mxu0
        %v584 = vmul.f32 %v576, 0.5
        %v585 = vmul.f32 %v581, 0.5
        %v586 = vtanh.pop %v584
        %v587 = vtanh.pop %v585
        %v588 = vadd.f32 %v586, 1.0
        %v589 = vadd.f32 %v587, 1.0
        %v590 = vmul.f32 %v588, 0.5
        %v591 = vmul.f32 %v589, 0.5
        %v592 = vld [vmem:[%s5] sm:$0xff]
        %v593 = vld [vmem:[%s5 + $0x8] sm:$0xff]
        %v594 = vld [vmem:[%s5 + $0x10] sm:$0xff]
        %v595 = vld [vmem:[%s5 + $0x18] sm:$0xff]
        %v596 = vld [vmem:[%s6] sm:$0x1]
        %v598 = vlaneseq
        %v599 = vshrl.u32 %v598, 7
        %v600 = vsub.s32 0, %v599
        %v601 = vrot.slane %v596, %v600
        %vm603 = vcmask 261120
        %v605 = vsel %vm603, %v590, 0
        %v608 = vsel %vm603, %v591, 0
        %610 = vmatprep.subr.mxu0 0.0
        %611 = vmatpush1.msra.mxu0 0.0
        %612 = vmatprep.subr.mxu0 0.0
        %613 = vmatpush1.msra.mxu0 0.0
        %614 = vmatprep.subr.mxu0 0.0
        %615 = vmatpush1.msra.mxu0 0.0
        %616 = vmatprep.subr.mxu0 0.0
        %617 = vmatpush1.msra.mxu0 0.0
        %618 = vmatprep.subr.mxu0 0.0
        %619 = vmatpush1.msra.mxu0 0.0
        %620 = vmatprep.subr.mxu0 0.0
        %621 = vmatpush1.msra.mxu0 0.0
        %622 = vmatprep.subr.mxu0 0.0
        %623 = vmatpush1.msra.mxu0 0.0
        %624 = vmatprep.subr.mxu0 0.0
        %625 = vmatpush1.msra.mxu0 0.0
        %626 = vmatprep.subr.mxu0 0.0
        %627 = vmatpush1.msra.mxu0 0.0
        %628 = vmatprep.subr.mxu0 0.0
        %629 = vmatpush1.msra.mxu0 0.0
        %630 = vmatprep.subr.mxu0 0.0
        %631 = vmatpush1.msra.mxu0 0.0
        %632 = vmatprep.subr.mxu0 0.0
        %633 = vmatpush1.msra.mxu0 0.0
        %634 = vmatprep.subr.mxu0 0.0
        %635 = vmatpush1.msra.mxu0 %v595
        %636 = vmatprep.subr.mxu0 0.0
        %637 = vmatpush1.msra.mxu0 %v594
        %638 = vmatprep.subr.mxu0 0.0
        %639 = vmatpush1.msra.mxu0 %v593
        %640 = vmatprep.subr.mxu0 0.0
        %641 = vmatpush1.msra.mxu0 %v592
        %642 = vmatprep.subr.mxu0 0.0
        %643 = vmatpush2.msra.mxu0 0.0
        %644 = vmatprep.subr.mxu0 0.0
        %645 = vmatpush2.msra.mxu0 0.0
        %646 = vmatprep.subr.mxu0 0.0
        %647 = vmatpush2.msra.mxu0 0.0
        %648 = vmatprep.subr.mxu0 0.0
        %649 = vmatpush2.msra.mxu0 0.0
        %650 = vmatprep.subr.mxu0 0.0
        %651 = vmatpush2.msra.mxu0 0.0
        %652 = vmatprep.subr.mxu0 0.0
        %653 = vmatpush2.msra.mxu0 0.0
        %654 = vmatprep.subr.mxu0 0.0
        %655 = vmatpush2.msra.mxu0 0.0
        %656 = vmatprep.subr.mxu0 0.0
        %657 = vmatpush2.msra.mxu0 0.0
        %658 = vmatprep.subr.mxu0 0.0
        %659 = vmatpush2.msra.mxu0 0.0
        %660 = vmatprep.subr.mxu0 0.0
        %661 = vmatpush2.msra.mxu0 0.0
        %662 = vmatprep.subr.mxu0 0.0
        %663 = vmatpush2.msra.mxu0 0.0
        %664 = vmatprep.subr.mxu0 0.0
        %665 = vmatpush2.msra.mxu0 0.0
        %666 = vmatprep.subr.mxu0 0.0
        %667 = vmatpush2.msra.mxu0 0.0
        %668 = vmatprep.subr.mxu0 0.0
        %669 = vmatpush2.msra.mxu0 0.0
        %670 = vmatprep.subr.mxu0 0.0
        %671 = vmatpush2.msra.mxu0 0.0
        %672 = vmatprep.subr.mxu0 0.0
        %673 = vmatpush2.msra.mxu0 0.0
        %674 = vmatprep.mubr.f32.mxu0 0.0
        %675 = vmatmul.mubr.f32.gmra.mxu0 %v605
        %v676 = vpop.f32.mrf.mxu0
        %v677 = vadd.f32 %v601, %v676
        %v678 = vpop.f32.mrf.mxu0
        %679 = vmatprep.mubr.f32.mxu0 0.0
        %680 = vmatmul.mubr.f32.gmra.mxu0 %v608
        %v681 = vpop.f32.mrf.mxu0
        %v682 = vadd.f32 %v601, %v681
        %v683 = vpop.f32.mrf.mxu0
        %684 = vdwg.mxu0
        %v685 = vmul.f32 %v677, 0.5
        %v686 = vmul.f32 %v682, 0.5
        %v687 = vtanh.pop %v685
        %v688 = vtanh.pop %v686
        %v689 = vadd.f32 %v687, 1.0
        %v690 = vadd.f32 %v688, 1.0
        %v691 = vmul.f32 %v689, 0.5
        %v692 = vmul.f32 %v690, 0.5
        %v693 = vpack.c.bf16 %v692, %v691
        %v694 = vld [vmem:[%s7] sm:$0xf]
        %v695 = vld [vmem:[%s7 + $0x4] sm:$0xf]
        %v696 = vld [vmem:[%s7 + $0x8] sm:$0xf]
        %v697 = vld [vmem:[%s7 + $0xc] sm:$0xf]
        %v698 = vld [vmem:[%s7 + $0x10] sm:$0xf]
        %v699 = vld [vmem:[%s7 + $0x14] sm:$0xf]
        %v700 = vld [vmem:[%s7 + $0x18] sm:$0xf]
        %v701 = vld [vmem:[%s7 + $0x1c] sm:$0xf]
        %v702 = vld [vmem:[%s8] sm:$0x1]
        %v704 = vlaneseq
        %v705 = vshrl.u32 %v704, 7
        %v706 = vsub.s32 0, %v705
        %v707 = vrot.slane %v702, %v706
        %v717 = vunpack.c.l.b16 %v694
        %v718 = vunpack.c.l.b16 %v695
        %v719 = vunpack.c.l.b16 %v696
        %v720 = vunpack.c.l.b16 %v697
        %v721 = vunpack.c.l.b16 %v698
        %v722 = vunpack.c.l.b16 %v699
        %v723 = vunpack.c.l.b16 %v700
        %v724 = vunpack.c.l.b16 %v701
        %v725 = vpack.c.b16 %v718, %v717
        %v726 = vpack.c.b16 %v720, %v719
        %v727 = vpack.c.b16 %v722, %v721
        %v728 = vpack.c.b16 %v724, %v723
        %vm733 = vcmask 523264
        %v735 = vsel %vm733, %v693, 0
        %737 = vmatprep.subr.bf16.mxu0 0
        %738 = vmatpush1.bf16.msra.mxu0 0
        %739 = vmatprep.subr.bf16.mxu0 0
        %740 = vmatpush1.bf16.msra.mxu0 0
        %741 = vmatprep.subr.bf16.mxu0 0
        %742 = vmatpush1.bf16.msra.mxu0 0
        %743 = vmatprep.subr.bf16.mxu0 0
        %744 = vmatpush1.bf16.msra.mxu0 0
        %745 = vmatprep.subr.bf16.mxu0 0
        %746 = vmatpush1.bf16.msra.mxu0 %v728
        %747 = vmatprep.subr.bf16.mxu0 0
        %748 = vmatpush1.bf16.msra.mxu0 %v727
        %749 = vmatprep.subr.bf16.mxu0 0
        %750 = vmatpush1.bf16.msra.mxu0 %v726
        %751 = vmatprep.subr.bf16.mxu0 0
        %752 = vmatpush1.bf16.msra.mxu0 %v725
        %753 = vmatprep.subr.bf16.mxu0 0
        %754 = vmatpush2.bf16.msra.mxu0 0
        %755 = vmatprep.subr.bf16.mxu0 0
        %756 = vmatpush2.bf16.msra.mxu0 0
        %757 = vmatprep.subr.bf16.mxu0 0
        %758 = vmatpush2.bf16.msra.mxu0 0
        %759 = vmatprep.subr.bf16.mxu0 0
        %760 = vmatpush2.bf16.msra.mxu0 0
        %761 = vmatprep.subr.bf16.mxu0 0
        %762 = vmatpush2.bf16.msra.mxu0 0
        %763 = vmatprep.subr.bf16.mxu0 0
        %764 = vmatpush2.bf16.msra.mxu0 0
        %765 = vmatprep.subr.bf16.mxu0 0
        %766 = vmatpush2.bf16.msra.mxu0 0
        %767 = vmatprep.subr.bf16.mxu0 0
        %768 = vmatpush2.bf16.msra.mxu0 0
        %769 = vmatprep.mubr.bf16.mxu0 0
        %770 = vmatmul.mubr.bf16.gmra.mxu0 %v735
        %v771 = vpop.f32.mrf.mxu0
        %v772 = vadd.f32 %v707, %v771
        %v773 = vpop.f32.mrf.mxu0
        %v774 = vpop.f32.mrf.mxu0
        %v775 = vadd.f32 %v707, %v774
        %v776 = vpop.f32.mrf.mxu0
        %777 = vdwg.mxu0
        %v778 = vmul.f32 %v772, 0.5
        %v779 = vmul.f32 %v775, 0.5
        %v780 = vtanh.pop %v778
        %v781 = vtanh.pop %v779
        %v782 = vadd.f32 %v780, 1.0
        %v783 = vadd.f32 %v781, 1.0
        %v784 = vmul.f32 %v782, 0.5
        %v785 = vmul.f32 %v783, 0.5
        %v786 = vpack.c.bf16 %v785, %v784
        %v787 = vld [vmem:[%s9] sm:$0xff]
        %v788 = vld [vmem:[%s9 + $0x8] sm:$0xf]
        %v789 = vld [vmem:[%s9 + $0xc] sm:$0xff]
        %v790 = vld [vmem:[%s9 + $0x14] sm:$0xf]
        %v791 = vld [vmem:[%s9 + $0x18] sm:$0xff]
        %v792 = vld [vmem:[%s9 + $0x20] sm:$0xf]
        %v793 = vld [vmem:[%s9 + $0x24] sm:$0xff]
        %v794 = vld [vmem:[%s9 + $0x2c] sm:$0xf]
        %v795 = vld [vmem:[%s9 + $0x30] sm:$0xff]
        %v796 = vld [vmem:[%s9 + $0x38] sm:$0xf]
        %v797 = vld [vmem:[%s9 + $0x3c] sm:$0xff]
        %v798 = vld [vmem:[%s9 + $0x44] sm:$0xf]
        %v799 = vld [vmem:[%s9 + $0x48] sm:$0xff]
        %v800 = vld [vmem:[%s9 + $0x50] sm:$0xf]
        %v801 = vld [vmem:[%s9 + $0x54] sm:$0xff]
        %v802 = vld [vmem:[%s9 + $0x5c] sm:$0xf]
        %v803 = vld [vmem:[%s9 + $0x60] sm:$0xff]
        %v804 = vld [vmem:[%s9 + $0x68] sm:$0xf]
        %v805 = vld [vmem:[%s9 + $0x6c] sm:$0xff]
        %v806 = vld [vmem:[%s9 + $0x74] sm:$0xf]
        %v807 = vld [vmem:[%s9 + $0x78] sm:$0xff]
        %v808 = vld [vmem:[%s9 + $0x80] sm:$0xf]
        %v809 = vld [vmem:[%s9 + $0x84] sm:$0xff]
        %v810 = vld [vmem:[%s9 + $0x8c] sm:$0xf]
        %v811 = vld [vmem:[%s9 + $0x90] sm:$0xff]
        %v812 = vld [vmem:[%s9 + $0x98] sm:$0xf]
        %v813 = vld [vmem:[%s9 + $0x9c] sm:$0xff]
        %v814 = vld [vmem:[%s9 + $0xa4] sm:$0xf]
        %v815 = vld [vmem:[%s9 + $0xa8] sm:$0xff]
        %v816 = vld [vmem:[%s9 + $0xb0] sm:$0xf]
        %v817 = vld [vmem:[%s9 + $0xb4] sm:$0xff]
        %v818 = vld [vmem:[%s9 + $0xbc] sm:$0xf]
        %v819 = vld [vmem:[%s10] sm:$0x7]
        %v821 = vlaneseq
        %v822 = vshrl.u32 %v821, 7
        %v823 = vsub.s32 0, %v822
        %v824 = vrot.slane %v819, %v823
        %v825 = vlaneseq
        %v826 = vshrl.u32 %v825, 7
        %v827 = vsub.s32 1, %v826
        %v828 = vrot.slane %v819, %v827
        %v829 = vlaneseq
        %v830 = vshrl.u32 %v829, 7
        %v831 = vsub.s32 2, %v830
        %v832 = vrot.slane %v819, %v831
        %v868 = vunpack.c.l.b16 %v787
        %v869 = vunpack.c.h.b16 %v787
        %v870 = vunpack.c.l.b16 %v788
        %v871 = vunpack.c.l.b16 %v789
        %v872 = vunpack.c.h.b16 %v789
        %v873 = vunpack.c.l.b16 %v790
        %v874 = vunpack.c.l.b16 %v791
        %v875 = vunpack.c.h.b16 %v791
        %v876 = vunpack.c.l.b16 %v792
        %v877 = vunpack.c.l.b16 %v793
        %v878 = vunpack.c.h.b16 %v793
        %v879 = vunpack.c.l.b16 %v794
        %v880 = vunpack.c.l.b16 %v795
        %v881 = vunpack.c.h.b16 %v795
        %v882 = vunpack.c.l.b16 %v796
        %v883 = vunpack.c.l.b16 %v797
        %v884 = vunpack.c.h.b16 %v797
        %v885 = vunpack.c.l.b16 %v798
        %v886 = vunpack.c.l.b16 %v799
        %v887 = vunpack.c.h.b16 %v799
        %v888 = vunpack.c.l.b16 %v800
        %v889 = vunpack.c.l.b16 %v801
        %v890 = vunpack.c.h.b16 %v801
        %v891 = vunpack.c.l.b16 %v802
        %v892 = vunpack.c.l.b16 %v803
        %v893 = vunpack.c.h.b16 %v803
        %v894 = vunpack.c.l.b16 %v804
        %v895 = vunpack.c.l.b16 %v805
        %v896 = vunpack.c.h.b16 %v805
        %v897 = vunpack.c.l.b16 %v806
        %v898 = vunpack.c.l.b16 %v807
        %v899 = vunpack.c.h.b16 %v807
        %v900 = vunpack.c.l.b16 %v808
        %v901 = vunpack.c.l.b16 %v809
        %v902 = vunpack.c.h.b16 %v809
        %v903 = vunpack.c.l.b16 %v810
        %v904 = vunpack.c.l.b16 %v811
        %v905 = vunpack.c.h.b16 %v811
        %v906 = vunpack.c.l.b16 %v812
        %v907 = vunpack.c.l.b16 %v813
        %v908 = vunpack.c.h.b16 %v813
        %v909 = vunpack.c.l.b16 %v814
        %v910 = vunpack.c.l.b16 %v815
        %v911 = vunpack.c.h.b16 %v815
        %v912 = vunpack.c.l.b16 %v816
        %v913 = vunpack.c.l.b16 %v817
        %v914 = vunpack.c.h.b16 %v817
        %v915 = vunpack.c.l.b16 %v818
        %v916 = vpack.c.b16 %v871, %v868
        %v917 = vpack.c.b16 %v872, %v869
        %v918 = vpack.c.b16 %v873, %v870
        %v919 = vpack.c.b16 %v877, %v874
        %v920 = vpack.c.b16 %v878, %v875
        %v921 = vpack.c.b16 %v879, %v876
        %v922 = vpack.c.b16 %v883, %v880
        %v923 = vpack.c.b16 %v884, %v881
        %v924 = vpack.c.b16 %v885, %v882
        %v925 = vpack.c.b16 %v889, %v886
        %v926 = vpack.c.b16 %v890, %v887
        %v927 = vpack.c.b16 %v891, %v888
        %v928 = vpack.c.b16 %v895, %v892
        %v929 = vpack.c.b16 %v896, %v893
        %v930 = vpack.c.b16 %v897, %v894
        %v931 = vpack.c.b16 %v901, %v898
        %v932 = vpack.c.b16 %v902, %v899
        %v933 = vpack.c.b16 %v903, %v900
        %v934 = vpack.c.b16 %v907, %v904
        %v935 = vpack.c.b16 %v908, %v905
        %v936 = vpack.c.b16 %v909, %v906
        %v937 = vpack.c.b16 %v913, %v910
        %v938 = vpack.c.b16 %v914, %v911
        %v939 = vpack.c.b16 %v915, %v912
        %964 = vmatprep.subr.bf16.mxu0 %v938
        %965 = vmatpush1.bf16.msra.mxu0 %v937
        %966 = vmatprep.subr.bf16.mxu0 %v935
        %967 = vmatpush1.bf16.msra.mxu0 %v934
        %968 = vmatprep.subr.bf16.mxu0 %v932
        %969 = vmatpush1.bf16.msra.mxu0 %v931
        %970 = vmatprep.subr.bf16.mxu0 %v929
        %971 = vmatpush1.bf16.msra.mxu0 %v928
        %972 = vmatprep.subr.bf16.mxu0 %v926
        %973 = vmatpush1.bf16.msra.mxu0 %v925
        %974 = vmatprep.subr.bf16.mxu0 %v923
        %975 = vmatpush1.bf16.msra.mxu0 %v922
        %976 = vmatprep.subr.bf16.mxu0 %v920
        %977 = vmatpush1.bf16.msra.mxu0 %v919
        %978 = vmatprep.subr.bf16.mxu0 %v917
        %979 = vmatpush1.bf16.msra.mxu0 %v916
        %980 = vmatprep.subr.bf16.mxu0 0
        %981 = vmatpush2.bf16.msra.mxu0 0
        %982 = vmatprep.subr.bf16.mxu0 0
        %983 = vmatpush2.bf16.msra.mxu0 0
        %984 = vmatprep.subr.bf16.mxu0 0
        %985 = vmatpush2.bf16.msra.mxu0 0
        %986 = vmatprep.subr.bf16.mxu0 0
        %987 = vmatpush2.bf16.msra.mxu0 0
        %988 = vmatprep.subr.bf16.mxu0 0
        %989 = vmatpush2.bf16.msra.mxu0 0
        %990 = vmatprep.subr.bf16.mxu0 0
        %991 = vmatpush2.bf16.msra.mxu0 0
        %992 = vmatprep.subr.bf16.mxu0 0
        %993 = vmatpush2.bf16.msra.mxu0 0
        %994 = vmatprep.subr.bf16.mxu0 0
        %995 = vmatpush2.bf16.msra.mxu0 0
        %996 = vmatprep.mubr.bf16.mxu0 0
        %997 = vmatmul.mubr.bf16.gmra.mxu0 %v786
        %v998 = vpop.f32.mrf.mxu0
        %v999 = vadd.f32 %v824, %v998
        %v1000 = vpop.f32.mrf.mxu0
        %v1001 = vadd.f32 %v828, %v1000
        %v1002 = vpop.f32.mrf.mxu0
        %v1003 = vadd.f32 %v824, %v1002
        %v1004 = vpop.f32.mrf.mxu0
        %v1005 = vadd.f32 %v828, %v1004
        %1006 = vdwg.mxu0
        %1007 = vmatprep.subr.bf16.mxu0 0
        %1008 = vmatpush1.bf16.msra.mxu0 %v939
        %1009 = vmatprep.subr.bf16.mxu0 0
        %1010 = vmatpush1.bf16.msra.mxu0 %v936
        %1011 = vmatprep.subr.bf16.mxu0 0
        %1012 = vmatpush1.bf16.msra.mxu0 %v933
        %1013 = vmatprep.subr.bf16.mxu0 0
        %1014 = vmatpush1.bf16.msra.mxu0 %v930
        %1015 = vmatprep.subr.bf16.mxu0 0
        %1016 = vmatpush1.bf16.msra.mxu0 %v927
        %1017 = vmatprep.subr.bf16.mxu0 0
        %1018 = vmatpush1.bf16.msra.mxu0 %v924
        %1019 = vmatprep.subr.bf16.mxu0 0
        %1020 = vmatpush1.bf16.msra.mxu0 %v921
        %1021 = vmatprep.subr.bf16.mxu0 0
        %1022 = vmatpush1.bf16.msra.mxu0 %v918
        %1023 = vmatprep.subr.bf16.mxu0 0
        %1024 = vmatpush2.bf16.msra.mxu0 0
        %1025 = vmatprep.subr.bf16.mxu0 0
        %1026 = vmatpush2.bf16.msra.mxu0 0
        %1027 = vmatprep.subr.bf16.mxu0 0
        %1028 = vmatpush2.bf16.msra.mxu0 0
        %1029 = vmatprep.subr.bf16.mxu0 0
        %1030 = vmatpush2.bf16.msra.mxu0 0
        %1031 = vmatprep.subr.bf16.mxu0 0
        %1032 = vmatpush2.bf16.msra.mxu0 0
        %1033 = vmatprep.subr.bf16.mxu0 0
        %1034 = vmatpush2.bf16.msra.mxu0 0
        %1035 = vmatprep.subr.bf16.mxu0 0
        %1036 = vmatpush2.bf16.msra.mxu0 0
        %1037 = vmatprep.subr.bf16.mxu0 0
        %1038 = vmatpush2.bf16.msra.mxu0 0
        %1039 = vmatprep.mubr.bf16.mxu0 0
        %1040 = vmatmul.mubr.bf16.gmra.mxu0 %v786
        %v1041 = vpop.f32.mrf.mxu0
        %v1042 = vadd.f32 %v832, %v1041
        %v1043 = vpop.f32.mrf.mxu0
        %v1044 = vpop.f32.mrf.mxu0
        %v1045 = vadd.f32 %v832, %v1044
        %v1046 = vpop.f32.mrf.mxu0
        %1047 = vdwg.mxu0
        %1048 = vst [vmem:[%s380] sm:$0xff] %v999
        %1049 = vst [vmem:[%s380 + $0x8] sm:$0xff] %v1001
        %vm1050 = vcmask 359424
        %1051 = vst.msk [vmem:[%s380 + $0x10] sm:$0xff] %vm1050, %v1042
        %1052 = vst [vmem:[%s380 + $0x18] sm:$0xff] %v1003
        %1053 = vst [vmem:[%s380 + $0x20] sm:$0xff] %v1005
        %1054 = vst.msk [vmem:[%s380 + $0x28] sm:$0xff] %vm1050, %v1045
        %s1055 = sand.u32 %s269, 1
        %s1056 = scalar_lea.sflag [#allocation3], %s1055
        %s1057 = sand.u32 %s269, 1
        %s1058 = smul.addr %s1057, 48
        %s1059 = scalar_lea.vmem [#allocation2], %s1058
        // Predicated region
        $region65: #{tpu_custom_call.1} parent=63 // pred_check
          %p1060 = pneg %p279
        $region66: #{tpu_custom_call.1} parent=63 // pred_check_branch
          %1062 = sbr.rel (%p1060) target = $region68
        $region67: #{tpu_custom_call.1} parent=63 // pred_region
          %s1063 = smul.u32 2, %s25
          %s1065 = ssub.s32 768, 768
          %1066 = vsyncadd %s1056, %s1065
          %s1067 = smul.addr %s1063, 3
          %s1068 = smul.addr %s1067, 128
          %s1069 = scalar_lea.hbm %s11, %s1068
          %s1070 = sshll.u32 %s1059, 4
          %s1071 = int_to_ptr.vmem [resolvable:$true] %s1070
          %1076 = dma.vmem_to_hbm [thread:$0]  %s1071, 768, %s1069, %s1056, 384, 384, 24
        $region68: #{tpu_custom_call.1} parent=63 // pred_fallthru
          _
      $region64: #{tpu_custom_call.1} parent=5 // pred_fallthru
        _
      %p1077 = scmp.le.s32.totalorder 2, %s20
      // Predicated region
      $region69: #{tpu_custom_call.1} parent=5 // pred_check
        %p1078 = pneg %p1077
      $region70: #{tpu_custom_call.1} parent=5 // pred_check_branch
        %1080 = sbr.rel (%p1078) target = $region72
      $region71: #{tpu_custom_call.1} parent=5 // pred_region
        %s1081 = ssub.s32 %s20, 2
        // Predicated region
        $region73: #{tpu_custom_call.1} parent=71 // pred_check
          %p1082 = pneg %p285
        $region74: #{tpu_custom_call.1} parent=71 // pred_check_branch
          %1084 = sbr.rel (%p1082) target = $region76
        $region75: #{tpu_custom_call.1} parent=71 // pred_region
          %s1085 = sand.u32 %s270, 1
          %s1086 = scalar_lea.sflag [#allocation3], %s1085
          %s1087 = sand.u32 %s270, 1
          %s1088 = smul.addr %s1087, 48
          %s1089 = scalar_lea.vmem [#allocation2], %s1088
          %1090 = dma.done %s1086, 768
        $region76: #{tpu_custom_call.1} parent=71 // pred_fallthru
          _
      $region72: #{tpu_custom_call.1} parent=5 // pred_fallthru
        _
    $region6: #{tpu_custom_call.1} parent=1 // loop_footer
      %s24 = sadd.s32 1, %s20
    $region7: #{tpu_custom_call.1} parent=1 // loop_footer_branch
      %19 = sbr.rel target = $region3
    $region8: #{tpu_custom_call.1} parent=1 // loop_exit
      _
    %1091 = vsyncpa [#allocation3], 1
    %s1092 = scalar_lea.sflag [#allocation3], 1
    %1093 = vsyncpa %s1092, 1

</llo_original>
